<compile_context>
chip_gen: v7x
topology: tpu7x:2x2x1
jax: 0.10.0
libtpu: 0.0.40
codegen_flags: <defaults>
</compile_context>

<pallas_src>
import functools

import jax
import jax.numpy as jnp
from jax.experimental import pallas as pl
from jax.experimental.pallas import tpu as pltpu

LANES = 128
SUBLANES = 8
MAX_ROW_BLOCK = 4096  # 4096x128 f32 = 2 MiB per input tile


def _int_pow(x, g):
    """x**g for non-negative integer g via repeated squaring (VPU only, no EUP)."""
    if g == 0:
        return jnp.ones_like(x)
    result = None
    base = x
    while g:
        if g & 1:
            result = base if result is None else result * base
        g >>= 1
        if g:
            base = base * base
    return result


def _focal_kernel(p_ref, l_ref, o_ref, acc_ref, *,
                  alpha, gamma, n_elems, row_block, acc_rows, has_tail):
    inner = pl.program_id(1)

    @pl.when(inner == 0)
    def _():
        acc_ref[...] = jnp.zeros_like(acc_ref)

    p = p_ref[...].astype(jnp.float32)
    lab = l_ref[...].astype(jnp.float32)

    if has_tail:
        # Mask out-of-range elements (ragged last tile / overhang grid points,
        # whose DMA was clamped to the last valid block) to (p=0, label=0),
        # which contributes exactly zero loss.
        block_idx = pl.program_id(0) * pl.num_programs(1) + inner
        row_ids = jax.lax.broadcasted_iota(jnp.int32, p.shape, 0)
        col_ids = jax.lax.broadcasted_iota(jnp.int32, p.shape, 1)
        global_idx = (block_idx * row_block + row_ids) * LANES + col_ids
        valid = global_idx < n_elems
        p = jnp.where(valid, p, 0.0)
        lab = jnp.where(valid, lab, 0.0)

    eps = jnp.float32(1e-07)
    one_m_p = 1.0 - p
    if float(gamma).is_integer() and gamma >= 0:
        g = int(gamma)
        pow_1mp = _int_pow(one_m_p, g)  # VPU squares, no EUP transcendentals
        pow_p = _int_pow(p, g)
    else:
        pow_1mp = jnp.power(one_m_p, gamma)
        pow_p = jnp.power(p, gamma)

    # loss_y1 = -alpha * (1 - p)^gamma * log(p + eps) * labels
    loss_y1 = (-alpha) * pow_1mp * jnp.log(p + eps) * lab
    # loss_y0 = -(1 - alpha) * p^gamma * log(1 - p + eps) * (1 - labels)
    loss_y0 = (-(1.0 - alpha)) * pow_p * jnp.log(one_m_p + eps) * (1.0 - lab)
    loss = loss_y0 + loss_y1

    # Accumulate into a vreg-shaped buffer: reduce only the leading
    # (row_block // 8) axis per step (pure vector adds, no cross-lane work).
    if acc_rows == SUBLANES:
        acc_ref[...] += loss.reshape(row_block // SUBLANES, SUBLANES, LANES).sum(axis=0)
    else:
        acc_ref[...] += loss.sum(axis=0, keepdims=True)

    @pl.when(inner == pl.num_programs(1) - 1)
    def _():
        # Write the raw per-core partial sums (lane-dense); the final reduce
        # and mean happen in the wrapper.
        o_ref[0] = acc_ref[...]


def binary_focal_loss(preds, labels, alpha=0.25, gamma=2.0):
    assert preds.shape == labels.shape
    n_elems = 1
    for d in preds.shape:
        n_elems *= int(d)

    # Contiguous ravel/reshape is a free bitcast (no HBM copy).  Keep the
    # native dtype (e.g. bf16) and upcast inside the kernel to halve traffic.
    p_flat = jnp.ravel(preds)
    l_flat = jnp.ravel(labels)

    rows = -(-n_elems // LANES)
    padded_len = rows * LANES
    if padded_len != n_elems:
        # Only triggered when the total size is not a multiple of 128; pads to
        # the next lane multiple (zero padding gives exactly zero loss and is
        # also covered by the in-kernel mask).
        p_flat = jnp.pad(p_flat, (0, padded_len - n_elems))
        l_flat = jnp.pad(l_flat, (0, padded_len - n_elems))

    p2d = p_flat.reshape(rows, LANES)
    l2d = l_flat.reshape(rows, LANES)

    row_block = rows if rows <= MAX_ROW_BLOCK else MAX_ROW_BLOCK
    n_blocks = -(-rows // row_block)
    # Two independent partial sums so the leading "parallel" grid axis can be
    # sharded across TensorCores on v7x (neutral on 1-TC v5e/v6e).
    n_outer = 2 if n_blocks >= 2 else 1
    n_inner = -(-n_blocks // n_outer)

    has_tail = (n_outer * n_inner * row_block * LANES) != n_elems
    acc_rows = SUBLANES if row_block % SUBLANES == 0 else 1

    if n_outer * n_inner == n_blocks:
        in_idx = lambda c, i: (c * n_inner + i, 0)
    else:
        # Overhang grid points re-read the last valid block (keeps the DMA
        # in-bounds); their contribution is masked to zero in the kernel.
        in_idx = lambda c, i: (jnp.minimum(c * n_inner + i, n_blocks - 1), 0)

    kernel = functools.partial(
        _focal_kernel,
        alpha=float(alpha), gamma=float(gamma), n_elems=n_elems,
        row_block=row_block, acc_rows=acc_rows, has_tail=has_tail,
    )

    partials = pl.pallas_call(
        kernel,
        out_shape=jax.ShapeDtypeStruct((n_outer, acc_rows, LANES), jnp.float32),
        grid_spec=pltpu.PrefetchScalarGridSpec(
            num_scalar_prefetch=0,
            grid=(n_outer, n_inner),
            in_specs=[
                pl.BlockSpec((row_block, LANES), in_idx),
                pl.BlockSpec((row_block, LANES), in_idx),
            ],
            out_specs=pl.BlockSpec((1, acc_rows, LANES), lambda c, i: (c, 0, 0)),
            scratch_shapes=[pltpu.VMEM((acc_rows, LANES), jnp.float32)],
        ),
        compiler_params=pltpu.CompilerParams(
            dimension_semantics=("parallel", "arbitrary"),
            vmem_limit_bytes=32 * 1024 * 1024,
        ),
    )(p2d, l2d)

    # Final cross-core / cross-lane reduce and mean (tiny: n_outer*8*128 f32).
    return jnp.sum(partials) / jnp.float32(n_elems)


def _reference(preds, labels, alpha=0.25, gamma=2.0):
    eps = 1e-07
    loss_y1 = -alpha * jnp.power(1 - preds, gamma) * jnp.log(preds + eps) * labels
    loss_y0 = -(1 - alpha) * jnp.power(preds, gamma) * jnp.log(1 - preds + eps) * (1 - labels)
    return jnp.mean(loss_y0 + loss_y1)


if __name__ == "__main__":
    key = jax.random.PRNGKey(0)
    kp, kl = jax.random.split(key)

    # NCHW-shaped example (layout is irrelevant for this elementwise loss).
    shape = (2, 4, 16, 16)
    preds = jax.random.uniform(kp, shape, dtype=jnp.float32, minval=0.01, maxval=0.99)
    labels = (jax.random.uniform(kl, shape, dtype=jnp.float32) > 0.5).astype(jnp.float32)

    loss = binary_focal_loss(preds, labels)
    jax.block_until_ready(loss)

    ref = _reference(preds, labels)
    assert jnp.allclose(loss, ref, rtol=1e-5, atol=1e-6), (loss, ref)
    print("KERNEL_OK")
</pallas_src>

<mosaic_0001>
module attributes {stable_mosaic.version = 11 : i64} {
  func.func @_focal_kernel(%arg0: i32, %arg1: i32, %arg2: memref<16x128xf32, #tpu.memory_space<vmem>>, %arg3: memref<16x128xf32, #tpu.memory_space<vmem>>, %arg4: memref<1x8x128xf32, #tpu.memory_space<vmem>>, %arg5: memref<8x128xf32, #tpu.memory_space<vmem>>) attributes {dimension_semantics = [#tpu.dimension_semantics<parallel>, #tpu.dimension_semantics<arbitrary>], iteration_bounds = array<i64: 1, 1>, scalar_prefetch = 0 : i64, scratch_operands = 1 : i64, tpu.core_type = #tpu.core_type<tc>, window_params = [{transform_indices = @transform_0, window_bounds = array<i64: 16, 128>}, {transform_indices = @transform_1, window_bounds = array<i64: 16, 128>}, {transform_indices = @transform_2, window_bounds = array<i64: 1, 8, 128>}]} {
    %c0_i32 = arith.constant 0 : i32
    %0 = arith.cmpi eq, %arg1, %c0_i32 : i32
    %1 = arith.extui %0 : i1 to i32
    %c0_i32_0 = arith.constant 0 : i32
    %2 = arith.cmpi ne, %1, %c0_i32_0 : i32
    scf.if %2 {
      %cst_16 = arith.constant 0.000000e+00 : f32
      %34 = vector.broadcast %cst_16 : f32 to vector<8x128xf32>
      %c0_17 = arith.constant 0 : index
      %c0_18 = arith.constant 0 : index
      %35 = vector.load %arg5[%c0_17, %c0_18] : memref<8x128xf32, #tpu.memory_space<vmem>>, vector<8x128xf32>
      tpu.vector_store %arg5[%c0_17, %c0_18], %34 {strides = array<i32>} : memref<8x128xf32, #tpu.memory_space<vmem>>, vector<8x128xf32>,
    } else {
    }
    %c0 = arith.constant 0 : index
    %c0_1 = arith.constant 0 : index
    %3 = vector.load %arg2[%c0, %c0_1] : memref<16x128xf32, #tpu.memory_space<vmem>>, vector<16x128xf32>
    %c0_2 = arith.constant 0 : index
    %c0_3 = arith.constant 0 : index
    %4 = vector.load %arg3[%c0_2, %c0_3] : memref<16x128xf32, #tpu.memory_space<vmem>>, vector<16x128xf32>
    %cst = arith.constant 1.000000e+00 : f32
    %5 = vector.broadcast %cst : f32 to vector<16x128xf32>
    %6 = arith.subf %5, %3 : vector<16x128xf32>
    %7 = arith.mulf %6, %6 : vector<16x128xf32>
    %8 = arith.mulf %3, %3 : vector<16x128xf32>
    %cst_4 = arith.constant -2.500000e-01 : f32
    %9 = vector.broadcast %cst_4 : f32 to vector<16x128xf32>
    %10 = arith.mulf %9, %7 : vector<16x128xf32>
    %cst_5 = arith.constant 1.000000e-07 : f32
    %11 = vector.broadcast %cst_5 : f32 to vector<16x128xf32>
    %12 = arith.addf %3, %11 : vector<16x128xf32>
    %13 = math.log %12 : vector<16x128xf32>
    %14 = arith.mulf %10, %13 : vector<16x128xf32>
    %15 = arith.mulf %14, %4 : vector<16x128xf32>
    %cst_6 = arith.constant -7.500000e-01 : f32
    %16 = vector.broadcast %cst_6 : f32 to vector<16x128xf32>
    %17 = arith.mulf %16, %8 : vector<16x128xf32>
    %cst_7 = arith.constant 1.000000e-07 : f32
    %18 = vector.broadcast %cst_7 : f32 to vector<16x128xf32>
    %19 = arith.addf %6, %18 : vector<16x128xf32>
    %20 = math.log %19 : vector<16x128xf32>
    %21 = arith.mulf %17, %20 : vector<16x128xf32>
    %cst_8 = arith.constant 1.000000e+00 : f32
    %22 = vector.broadcast %cst_8 : f32 to vector<16x128xf32>
    %23 = arith.subf %22, %4 : vector<16x128xf32>
    %24 = arith.mulf %21, %23 : vector<16x128xf32>
    %25 = arith.addf %24, %15 : vector<16x128xf32>
    %c0_9 = arith.constant 0 : index
    %c0_10 = arith.constant 0 : index
    %26 = vector.load %arg5[%c0_9, %c0_10] : memref<8x128xf32, #tpu.memory_space<vmem>>, vector<8x128xf32>
    %27 = vector.shape_cast %25 : vector<16x128xf32> to vector<2x8x128xf32>
    %cst_11 = arith.constant dense<0.000000e+00> : vector<8x128xf32>
    %28 = vector.multi_reduction <add>, %27, %cst_11 [0] : vector<2x8x128xf32> to vector<8x128xf32>
    %29 = arith.addf %26, %28 : vector<8x128xf32>
    %c0_12 = arith.constant 0 : index
    %c0_13 = arith.constant 0 : index
    %30 = vector.load %arg5[%c0_12, %c0_13] : memref<8x128xf32, #tpu.memory_space<vmem>>, vector<8x128xf32>
    tpu.vector_store %arg5[%c0_12, %c0_13], %29 {strides = array<i32>} : memref<8x128xf32, #tpu.memory_space<vmem>>, vector<8x128xf32>,
    %c0_i32_14 = arith.constant 0 : i32
    %31 = arith.cmpi eq, %arg1, %c0_i32_14 : i32
    %32 = arith.extui %31 : i1 to i32
    %c0_i32_15 = arith.constant 0 : i32
    %33 = arith.cmpi ne, %32, %c0_i32_15 : i32
    scf.if %33 {
      %c0_16 = arith.constant 0 : index
      %c0_17 = arith.constant 0 : index
      %34 = vector.load %arg5[%c0_16, %c0_17] : memref<8x128xf32, #tpu.memory_space<vmem>>, vector<8x128xf32>
      %c0_18 = arith.constant 0 : index
      %c0_19 = arith.constant 0 : index
      %c0_20 = arith.constant 0 : index
      %35 = vector.load %arg4[%c0_18, %c0_19, %c0_20] : memref<1x8x128xf32, #tpu.memory_space<vmem>>, vector<1x8x128xf32>
      %36 = vector.shape_cast %35 : vector<1x8x128xf32> to vector<8x128xf32>
      %37 = vector.shape_cast %34 : vector<8x128xf32> to vector<1x8x128xf32>
      tpu.vector_store %arg4[%c0_18, %c0_19, %c0_20], %37 {strides = array<i32>} : memref<1x8x128xf32, #tpu.memory_space<vmem>>, vector<1x8x128xf32>,
    } else {
    }
    return
  }
  func.func @transform_0(%arg0: i32, %arg1: i32) -> (i32, i32) {
    %c1_i32 = arith.constant 1 : i32
    %0 = arith.muli %arg0, %c1_i32 : i32
    %1 = arith.addi %0, %arg1 : i32
    %c0_i32 = arith.constant 0 : i32
    %c0_i32_0 = arith.constant 0 : i32
    return %1, %c0_i32 : i32, i32
  }
  func.func @transform_1(%arg0: i32, %arg1: i32) -> (i32, i32) {
    %c1_i32 = arith.constant 1 : i32
    %0 = arith.muli %arg0, %c1_i32 : i32
    %1 = arith.addi %0, %arg1 : i32
    %c0_i32 = arith.constant 0 : i32
    %c0_i32_0 = arith.constant 0 : i32
    return %1, %c0_i32 : i32, i32
  }
  func.func @transform_2(%arg0: i32, %arg1: i32) -> (i32, i32, i32) {
    %c0_i32 = arith.constant 0 : i32
    %c0_i32_0 = arith.constant 0 : i32
    %c0_i32_1 = arith.constant 0 : i32
    return %arg0, %c0_i32, %c0_i32_0 : i32, i32, i32
  }
}

</mosaic_0001>

<llo_original>
// kernel: tpu_custom_call.1
$region0: #{tpu_custom_call.1}
  #allocation0 [shape = 'u32[]', space=smem, size = 0x4, offset = 0x4, fixed_abs, tag = 'smem constant byte address 0x4 - core index']
  #allocation1 [shape = 'u32[144,128]{1,0:T(1,128)}', space=vmem, size = 0x12000, scoped, tag = 'internal scratch']
  #allocation2 [shape = 'f32[8,128]{1,0:T(8,128)}', space=vmem, size = 0x1000, scoped, tag = 'scratch operand']
  %s0 = inlined_call_operand.hbm [shape: f32[16,128], index: 0, kind: input, shape index: {}]
  %s1 = inlined_call_operand.hbm [shape: f32[16,128], index: 1, kind: input, shape index: {}]
  %s2 = inlined_call_operand.hbm [shape: f32[1,8,128], index: 2, kind: output, shape index: {}]
  %s3 = sld [smem:[#allocation0]]
  $region34: #{tpu_custom_call.1} parent=0
    _
  %s5 = ssub.s32 1, %s3
  %s6 = scalar_select 0, %s5, %s3
  $region1: #{tpu_custom_call.1} parent=0
    #allocation3 [shape = 'u8[8192]{0}', space=vmem, size = 0x2000, scoped, tag = 'input window, operand 0, single buffered']
    #allocation4 [shape = 's32[1]{0}', space=sflag, size = 0x4, scoped, tag = 'scoped memory for tpu_custom_call.1']
    #allocation5 [shape = 's32[1]{0}', space=sflag, size = 0x4, scoped, tag = 'scoped memory for tpu_custom_call.1']
    #allocation6 [shape = 'u8[8192]{0}', space=vmem, size = 0x2000, scoped, tag = 'input window, operand 1, single buffered']
    #allocation7 [shape = 's32[1]{0}', space=sflag, size = 0x4, scoped, tag = 'scoped memory for tpu_custom_call.1']
    #allocation8 [shape = 'u8[4096]{0}', space=vmem, size = 0x1000, scoped, tag = 'output window, operand 0, single buffered']
    %7 = vsyncpa [#allocation4], 0
    %8 = vsyncpa [#allocation7], 0
    %9 = vsyncpa [#allocation5], 0
    // Predicated region
    $region2: #{tpu_custom_call.1} parent=1 // pred_check
      _
    $region3: #{tpu_custom_call.1} parent=1 // pred_check_branch
      %11 = sbr.rel (0) target = $region5
    $region4: #{tpu_custom_call.1} parent=1 // pred_region
      %s12 = sadd.s32 0, 0
      %s13 = smul.u32 2, %s12
      %s15 = ssub.s32 256, 256
      %16 = vsyncadd [#allocation4], %s15
      %s17 = smul.addr %s13, 128
      %s18 = scalar_lea.hbm %s0, %s17
      %s19 = sshll.u32 [#allocation3], 4
      %s20 = int_to_ptr.vmem [resolvable:$true] %s19
      %25 = dma.hbm_to_vmem [thread:$0]  %s18, 256, %s20, [#allocation4], 128, 128, 8
    $region5: #{tpu_custom_call.1} parent=1 // pred_fallthru
      _
    // Predicated region
    $region6: #{tpu_custom_call.1} parent=1 // pred_check
      _
    $region7: #{tpu_custom_call.1} parent=1 // pred_check_branch
      %27 = sbr.rel (0) target = $region9
    $region8: #{tpu_custom_call.1} parent=1 // pred_region
      %s28 = sadd.s32 0, 0
      %s29 = smul.u32 2, %s28
      %s31 = ssub.s32 256, 256
      %32 = vsyncadd [#allocation7], %s31
      %s33 = smul.addr %s29, 128
      %s34 = scalar_lea.hbm %s1, %s33
      %s35 = sshll.u32 [#allocation6], 4
      %s36 = int_to_ptr.vmem [resolvable:$true] %s35
      %41 = dma.hbm_to_vmem [thread:$0]  %s34, 256, %s36, [#allocation7], 128, 128, 8
    $region9: #{tpu_custom_call.1} parent=1 // pred_fallthru
      _
    // Predicated region
    $region10: #{tpu_custom_call.1} parent=1 // pred_check
      _
    $region11: #{tpu_custom_call.1} parent=1 // pred_check_branch
      %43 = sbr.rel (0) target = $region13
    $region12: #{tpu_custom_call.1} parent=1 // pred_region
      %44 = dma.done [#allocation4], 256
    $region13: #{tpu_custom_call.1} parent=1 // pred_fallthru
      _
    // Predicated region
    $region14: #{tpu_custom_call.1} parent=1 // pred_check
      _
    $region15: #{tpu_custom_call.1} parent=1 // pred_check_branch
      %46 = sbr.rel (0) target = $region17
    $region16: #{tpu_custom_call.1} parent=1 // pred_region
      %47 = dma.done [#allocation7], 256
    $region17: #{tpu_custom_call.1} parent=1 // pred_fallthru
      _
    %s48 = sadd.s32 0, 0
    %s49 = smul.u32 2, %s48
    %s50 = sadd.s32 0, 0
    %s51 = smul.u32 2, %s50
    %p52 = scmp.eq.s32.totalorder 0, 0
    // Predicated region
    $region18: #{tpu_custom_call.1} parent=1 // pred_check
      %p53 = pneg %p52
    $region19: #{tpu_custom_call.1} parent=1 // pred_check_branch
      %55 = sbr.rel (%p53) target = $region21
    $region20: #{tpu_custom_call.1} parent=1 // pred_region
      %56 = vst [vmem:[#allocation2] sm:$0xff] 0.0
    $region21: #{tpu_custom_call.1} parent=1 // pred_fallthru
      _
    %v57 = vld [vmem:[#allocation3] sm:$0xff]
    %v58 = vld [vmem:[#allocation3 + $0x8] sm:$0xff]
    %v59 = vld [vmem:[#allocation6] sm:$0xff]
    %v60 = vld [vmem:[#allocation6 + $0x8] sm:$0xff]
    %v61 = vsub.f32 1.0, %v57
    %v62 = vsub.f32 1.0, %v58
    %v63 = vmul.f32 %v61, %v61
    %v64 = vmul.f32 %v62, %v62
    %v65 = vmul.f32 %v57, %v57
    %v66 = vmul.f32 %v58, %v58
    %v67 = vmul.f32 %v63, -0.25
    %v68 = vmul.f32 %v64, -0.25
    %v69 = vadd.f32 %v57, 1e-07
    %v70 = vadd.f32 %v58, 1e-07
    %v71 = vlog2.pop %v69
    %v72 = vmul.f32 %v71, 0.6931472
    %v73 = vlog2.pop %v70
    %v74 = vmul.f32 %v73, 0.6931472
    %v75 = vmul.f32 %v67, %v72
    %v76 = vmul.f32 %v68, %v74
    %v77 = vmul.f32 %v75, %v59
    %v78 = vmul.f32 %v76, %v60
    %v79 = vmul.f32 %v65, -0.75
    %v80 = vmul.f32 %v66, -0.75
    %v81 = vadd.f32 %v61, 1e-07
    %v82 = vadd.f32 %v62, 1e-07
    %v83 = vlog2.pop %v81
    %v84 = vmul.f32 %v83, 0.6931472
    %v85 = vlog2.pop %v82
    %v86 = vmul.f32 %v85, 0.6931472
    %v87 = vmul.f32 %v79, %v84
    %v88 = vmul.f32 %v80, %v86
    %v89 = vsub.f32 1.0, %v59
    %v90 = vsub.f32 1.0, %v60
    %v91 = vmul.f32 %v87, %v89
    %v92 = vmul.f32 %v88, %v90
    %v93 = vadd.f32 %v91, %v77
    %v94 = vadd.f32 %v92, %v78
    %v95 = vld [vmem:[#allocation2] sm:$0xff]
    %v96 = vadd.f32 %v93, %v94
    %v97 = vadd.f32 %v95, %v96
    %98 = vst [vmem:[#allocation2] sm:$0xff] %v97
    // Predicated region
    $region22: #{tpu_custom_call.1} parent=1 // pred_check
      %p99 = pneg %p52
    $region23: #{tpu_custom_call.1} parent=1 // pred_check_branch
      %101 = sbr.rel (%p99) target = $region25
    $region24: #{tpu_custom_call.1} parent=1 // pred_region
      %v102 = vld [vmem:[#allocation2] sm:$0xff]
      %103 = vst [vmem:[#allocation8] sm:$0xff] %v102
    $region25: #{tpu_custom_call.1} parent=1 // pred_fallthru
      _
    // Predicated region
    $region26: #{tpu_custom_call.1} parent=1 // pred_check
      _
    $region27: #{tpu_custom_call.1} parent=1 // pred_check_branch
      %105 = sbr.rel (0) target = $region29
    $region28: #{tpu_custom_call.1} parent=1 // pred_region
      %s107 = ssub.s32 128, 128
      %108 = vsyncadd [#allocation5], %s107
      %s110 = sshll.u32 [#allocation8], 4
      %s111 = int_to_ptr.vmem [resolvable:$true] %s110
      %113 = dma.vmem_to_hbm [thread:$0]  %s111, 128, %s2, [#allocation5]
    $region29: #{tpu_custom_call.1} parent=1 // pred_fallthru
      _
    // Predicated region
    $region30: #{tpu_custom_call.1} parent=1 // pred_check
      _
    $region31: #{tpu_custom_call.1} parent=1 // pred_check_branch
      %115 = sbr.rel (0) target = $region33
    $region32: #{tpu_custom_call.1} parent=1 // pred_region
      %116 = dma.done [#allocation5], 128
    $region33: #{tpu_custom_call.1} parent=1 // pred_fallthru
      _
    %117 = vsyncpa [#allocation4], 1
    %118 = vsyncpa [#allocation7], 1
    %119 = vsyncpa [#allocation5], 1

</llo_original>
